<compile_context>
chip_gen: v5e
topology: v5e:2x2
jax: 0.10.0
libtpu: 0.0.40
codegen_flags: <defaults>
</compile_context>

<pallas_src>
import functools
import math

import jax
import jax.numpy as jnp
from jax.experimental import pallas as pl
from jax.experimental.pallas import tpu as pltpu


def _round_up(x: int, m: int) -> int:
    return (x + m - 1) // m * m


def _pick_chunk(i_pad: int, block_i: int) -> int:
    """Largest multiple of 128 that divides i_pad and is <= block_i."""
    c = min(block_i, i_pad)
    c = (c // 128) * 128
    while i_pad % c != 0:
        c -= 128
    return c


def _ffn_kernel(*refs, train: bool, dropout_p: float):
    if train and dropout_p > 0.0:
        x_ref, w1_ref, b1_ref, w2_ref, b2_ref, seed_ref, o_ref, acc_ref = refs
    else:
        x_ref, w1_ref, b1_ref, w2_ref, b2_ref, o_ref, acc_ref = refs
        seed_ref = None

    c = pl.program_id(1)

    @pl.when(c == 0)
    def _():
        acc_ref[...] = jnp.zeros_like(acc_ref)

    # Linear 1 on this I-chunk: x cast to bf16 in-kernel (VPU cast is free
    # filler), bf16 MXU operands, f32 accumulation, fused bias add.
    xb = x_ref[...].astype(w1_ref.dtype)
    h = jnp.dot(xb, w1_ref[...],
                preferred_element_type=jnp.float32) + b1_ref[...]

    # GELU on the resident VMEM chunk.
    # TODO(synk): PyTorch nn.GELU() default is the exact erf formulation; the
    # tanh approximation is used here (max abs difference ~1e-3).
    h = jax.nn.gelu(h, approximate=True)

    # Linear 2 partial product for this chunk, accumulated in f32 VMEM scratch.
    acc_ref[...] += jnp.dot(h.astype(w2_ref.dtype), w2_ref[...],
                            preferred_element_type=jnp.float32)

    @pl.when(c == pl.num_programs(1) - 1)
    def _():
        y = acc_ref[...] + b2_ref[...]
        if train and dropout_p > 0.0:
            # Training-mode dropout via the on-chip PRNG (per-row-tile seed).
            pltpu.prng_seed(seed_ref[0] + pl.program_id(0))
            bits = pltpu.bitcast(pltpu.prng_random_bits(y.shape), jnp.uint32)
            threshold = jnp.uint32(int(dropout_p * float(2**32 - 1)))
            keep = bits >= threshold
            y = jnp.where(keep, y * (1.0 / (1.0 - dropout_p)), 0.0)
        # Single lane-dense store in the input dtype (halves writeback vs f32
        # when the model runs bf16 activations).
        o_ref[...] = y.astype(o_ref.dtype)


def prepare_params(params):
    """One-time weight prep (hoisted out of the per-call path):
    zero-pad H/I to multiples of 128 and cast the matmul operands to bf16."""
    H, I = params["w1"].shape
    H_pad, I_pad = _round_up(H, 128), _round_up(I, 128)
    w1 = jnp.zeros((H_pad, I_pad), jnp.bfloat16).at[:H, :I].set(
        params["w1"].astype(jnp.bfloat16))
    b1 = jnp.zeros((1, I_pad), jnp.float32).at[:, :I].set(
        params["b1"].reshape(1, I).astype(jnp.float32))
    w2 = jnp.zeros((I_pad, H_pad), jnp.bfloat16).at[:I, :H].set(
        params["w2"].astype(jnp.bfloat16))
    b2 = jnp.zeros((1, H_pad), jnp.float32).at[:, :H].set(
        params["b2"].reshape(1, H).astype(jnp.float32))
    return {"w1": w1, "b1": b1, "w2": w2, "b2": b2,
            "hidden_size": H, "intermediate_size": I}


def feed_forward(x, prepared, *, dropout_p: float = 0.0, train: bool = False,
                 seed: int = 0, block_m: int = 256, block_i: int = 512):
    """x: (..., hidden_size) -> (..., hidden_size). Matches FeedForward.forward."""
    w1, b1, w2, b2 = (prepared["w1"], prepared["b1"],
                      prepared["w2"], prepared["b2"])
    H = prepared["hidden_size"]
    H_pad, I_pad = w1.shape

    orig_shape = x.shape
    M = math.prod(orig_shape[:-1])
    x2 = x.reshape(M, H)
    if H_pad != H:
        # Zero-pad the contraction dim only when needed (required for
        # correctness of the first matmul with the padded W1).
        x2 = jnp.pad(x2, ((0, 0), (0, H_pad - H)))

    # Row tile: multiple of 16 (bf16 sublane packing); no M padding — the
    # trailing partial tile's junk rows are simply never written back.
    tm = min(block_m, _round_up(M, 16))
    grid_m = pl.cdiv(M, tm)
    # Intermediate-dim chunk: streams W1/W2 through double-buffered VMEM tiles.
    tc = _pick_chunk(I_pad, block_i)
    grid_c = I_pad // tc

    inputs = [x2, w1, b1, w2, b2]
    in_specs = [
        pl.BlockSpec((tm, H_pad), lambda i, c: (i, 0)),    # x row tile (resident over c)
        pl.BlockSpec((H_pad, tc), lambda i, c: (0, c)),    # W1 chunk (streams)
        pl.BlockSpec((1, tc), lambda i, c: (0, c)),        # b1 chunk
        pl.BlockSpec((tc, H_pad), lambda i, c: (c, 0)),    # W2 chunk (streams)
        pl.BlockSpec((1, H_pad), lambda i, c: (0, 0)),     # b2 (constant)
    ]
    use_dropout = train and dropout_p > 0.0
    if use_dropout:
        inputs.append(jnp.asarray([seed], jnp.int32))
        in_specs.append(pl.BlockSpec(memory_space=pltpu.MemorySpace.SMEM))

    out_dtype = x.dtype
    itemsize_x = jnp.dtype(x.dtype).itemsize
    cost = pl.CostEstimate(
        flops=int(4 * M * H_pad * I_pad),
        transcendentals=int(M * I_pad),
        bytes_accessed=int(M * H_pad * itemsize_x            # x read
                           + (w1.size + w2.size) * 2         # bf16 weights
                           + (b1.size + b2.size) * 4         # f32 biases
                           + M * H_pad * itemsize_x),        # output write
    )

    kernel = functools.partial(_ffn_kernel, train=train, dropout_p=dropout_p)
    out = pl.pallas_call(
        kernel,
        out_shape=jax.ShapeDtypeStruct((M, H_pad), out_dtype),
        grid_spec=pltpu.PrefetchScalarGridSpec(
            num_scalar_prefetch=0,
            grid=(grid_m, grid_c),
            in_specs=in_specs,
            out_specs=pl.BlockSpec((tm, H_pad), lambda i, c: (i, 0)),
            scratch_shapes=[pltpu.VMEM((tm, H_pad), jnp.float32)],
        ),
        compiler_params=pltpu.CompilerParams(
            dimension_semantics=("parallel", "arbitrary"),
            vmem_limit_bytes=48 * 1024 * 1024,
        ),
        cost_estimate=cost,
    )(*inputs)

    if H_pad != H:
        out = out[:, :H]
    return out.reshape(orig_shape)


def feed_forward_reference(x, params):
    """Pure-JAX f32 reference mirroring the PyTorch forward (eval mode)."""
    h = x @ params["w1"] + params["b1"]
    h = jax.nn.gelu(h, approximate=True)
    y = h @ params["w2"] + params["b2"]
    return y  # dropout is identity at inference


def init_params(key, hidden_size, intermediate_size):
    """nn.Linear-style init; weights stored as (in_features, out_features)."""
    k1, k2, k3, k4 = jax.random.split(key, 4)
    lim1 = 1.0 / math.sqrt(hidden_size)
    lim2 = 1.0 / math.sqrt(intermediate_size)
    return {
        "w1": jax.random.uniform(k1, (hidden_size, intermediate_size),
                                 jnp.float32, -lim1, lim1),
        "b1": jax.random.uniform(k2, (intermediate_size,),
                                 jnp.float32, -lim1, lim1),
        "w2": jax.random.uniform(k3, (intermediate_size, hidden_size),
                                 jnp.float32, -lim2, lim2),
        "b2": jax.random.uniform(k4, (hidden_size,),
                                 jnp.float32, -lim2, lim2),
    }


if __name__ == "__main__":
    HIDDEN, INTERMEDIATE = 32, 128
    BATCH, SEQ = 2, 8
    DROPOUT_P = 0.1

    key = jax.random.PRNGKey(0)
    kx, kp = jax.random.split(key)
    x = jax.random.normal(kx, (BATCH, SEQ, HIDDEN), jnp.float32)
    params = init_params(kp, HIDDEN, INTERMEDIATE)

    # One-time weight padding / bf16 cast (hoisted out of the per-call path).
    prepared = prepare_params(params)

    # Inference-mode forward (dropout is identity), matching module.eval().
    out = feed_forward(x, prepared, dropout_p=DROPOUT_P, train=False)
    out = jax.block_until_ready(out)

    ref = feed_forward_reference(x, params)
    assert out.shape == ref.shape
    max_diff = float(jnp.max(jnp.abs(out.astype(jnp.float32) - ref)))
    assert jnp.allclose(out.astype(jnp.float32), ref, atol=3e-2, rtol=3e-2), (
        f"Pallas kernel mismatch vs reference; max abs diff = {max_diff}")

    print("KERNEL_OK")
</pallas_src>

<mosaic_0001>
module attributes {stable_mosaic.version = 11 : i64} {
  func.func @_ffn_kernel(%arg0: i32, %arg1: i32, %arg2: memref<16x128xf32, #tpu.memory_space<vmem>>, %arg3: memref<128x128xbf16, #tpu.memory_space<vmem>>, %arg4: memref<1x128xf32, #tpu.memory_space<vmem>>, %arg5: memref<128x128xbf16, #tpu.memory_space<vmem>>, %arg6: memref<1x128xf32, #tpu.memory_space<vmem>>, %arg7: memref<16x128xf32, #tpu.memory_space<vmem>>, %arg8: memref<16x128xf32, #tpu.memory_space<vmem>>) attributes {dimension_semantics = [#tpu.dimension_semantics<parallel>, #tpu.dimension_semantics<arbitrary>], iteration_bounds = array<i64: 1, 1>, scalar_prefetch = 0 : i64, scratch_operands = 1 : i64, tpu.core_type = #tpu.core_type<tc>, window_params = [{transform_indices = @transform_0, window_bounds = array<i64: 16, 128>}, {transform_indices = @transform_1, window_bounds = array<i64: 128, 128>}, {transform_indices = @transform_2, window_bounds = array<i64: 1, 128>}, {transform_indices = @transform_3, window_bounds = array<i64: 128, 128>}, {pipeline_mode = #tpu.pipeline_mode<synchronous>, transform_indices = @transform_4, window_bounds = array<i64: 1, 128>}, {transform_indices = @transform_5, window_bounds = array<i64: 16, 128>}]} {
    %c0_i32 = arith.constant 0 : i32
    %0 = arith.cmpi eq, %arg1, %c0_i32 : i32
    %1 = arith.extui %0 : i1 to i32
    %c0_i32_0 = arith.constant 0 : i32
    %2 = arith.cmpi ne, %1, %c0_i32_0 : i32
    scf.if %2 {
      %cst_19 = arith.constant 0.000000e+00 : f32
      %32 = vector.broadcast %cst_19 : f32 to vector<16x128xf32>
      %c0_20 = arith.constant 0 : index
      %c0_21 = arith.constant 0 : index
      %33 = vector.load %arg8[%c0_20, %c0_21] : memref<16x128xf32, #tpu.memory_space<vmem>>, vector<16x128xf32>
      tpu.vector_store %arg8[%c0_20, %c0_21], %32 {strides = array<i32>} : memref<16x128xf32, #tpu.memory_space<vmem>>, vector<16x128xf32>,
    } else {
    }
    %c0 = arith.constant 0 : index
    %c0_1 = arith.constant 0 : index
    %3 = vector.load %arg2[%c0, %c0_1] : memref<16x128xf32, #tpu.memory_space<vmem>>, vector<16x128xf32>
    %4 = arith.truncf %3 : vector<16x128xf32> to vector<16x128xbf16>
    %c0_2 = arith.constant 0 : index
    %c0_3 = arith.constant 0 : index
    %5 = vector.load %arg3[%c0_2, %c0_3] : memref<128x128xbf16, #tpu.memory_space<vmem>>, vector<128x128xbf16>
    %cst = arith.constant dense<0.000000e+00> : vector<16x128xf32>
    %6 = tpu.matmul %4, %5, %cst {dimension_numbers = #tpu.dot_dimension_numbers<[1], [0], [0], [1], [0, 0, 1, 1], [], []>} : vector<16x128xbf16>, vector<128x128xbf16>, vector<16x128xf32> -> vector<16x128xf32>
    %c0_4 = arith.constant 0 : index
    %c0_5 = arith.constant 0 : index
    %7 = vector.load %arg4[%c0_4, %c0_5] : memref<1x128xf32, #tpu.memory_space<vmem>>, vector<1x128xf32>
    %8 = vector.broadcast %7 : vector<1x128xf32> to vector<16x128xf32>
    %9 = arith.addf %6, %8 : vector<16x128xf32>
    %10 = arith.mulf %9, %9 : vector<16x128xf32>
    %11 = arith.mulf %9, %10 : vector<16x128xf32>
    %cst_6 = arith.constant 4.471500e-02 : f32
    %12 = vector.broadcast %cst_6 : f32 to vector<16x128xf32>
    %13 = arith.mulf %12, %11 : vector<16x128xf32>
    %14 = arith.addf %9, %13 : vector<16x128xf32>
    %cst_7 = arith.constant 0.797884583 : f32
    %15 = vector.broadcast %cst_7 : f32 to vector<16x128xf32>
    %16 = arith.mulf %15, %14 : vector<16x128xf32>
    %17 = math.tanh %16 : vector<16x128xf32>
    %cst_8 = arith.constant 1.000000e+00 : f32
    %18 = vector.broadcast %cst_8 : f32 to vector<16x128xf32>
    %19 = arith.addf %18, %17 : vector<16x128xf32>
    %cst_9 = arith.constant 5.000000e-01 : f32
    %20 = vector.broadcast %cst_9 : f32 to vector<16x128xf32>
    %21 = arith.mulf %20, %19 : vector<16x128xf32>
    %22 = arith.mulf %9, %21 : vector<16x128xf32>
    %c0_10 = arith.constant 0 : index
    %c0_11 = arith.constant 0 : index
    %23 = vector.load %arg8[%c0_10, %c0_11] : memref<16x128xf32, #tpu.memory_space<vmem>>, vector<16x128xf32>
    %24 = arith.truncf %22 : vector<16x128xf32> to vector<16x128xbf16>
    %c0_12 = arith.constant 0 : index
    %c0_13 = arith.constant 0 : index
    %25 = vector.load %arg5[%c0_12, %c0_13] : memref<128x128xbf16, #tpu.memory_space<vmem>>, vector<128x128xbf16>
    %cst_14 = arith.constant dense<0.000000e+00> : vector<16x128xf32>
    %26 = tpu.matmul %24, %25, %cst_14 {dimension_numbers = #tpu.dot_dimension_numbers<[1], [0], [0], [1], [0, 0, 1, 1], [], []>} : vector<16x128xbf16>, vector<128x128xbf16>, vector<16x128xf32> -> vector<16x128xf32>
    %27 = arith.addf %23, %26 : vector<16x128xf32>
    %c0_15 = arith.constant 0 : index
    %c0_16 = arith.constant 0 : index
    %28 = vector.load %arg8[%c0_15, %c0_16] : memref<16x128xf32, #tpu.memory_space<vmem>>, vector<16x128xf32>
    tpu.vector_store %arg8[%c0_15, %c0_16], %27 {strides = array<i32>} : memref<16x128xf32, #tpu.memory_space<vmem>>, vector<16x128xf32>,
    %c0_i32_17 = arith.constant 0 : i32
    %29 = arith.cmpi eq, %arg1, %c0_i32_17 : i32
    %30 = arith.extui %29 : i1 to i32
    %c0_i32_18 = arith.constant 0 : i32
    %31 = arith.cmpi ne, %30, %c0_i32_18 : i32
    scf.if %31 {
      %c0_19 = arith.constant 0 : index
      %c0_20 = arith.constant 0 : index
      %32 = vector.load %arg8[%c0_19, %c0_20] : memref<16x128xf32, #tpu.memory_space<vmem>>, vector<16x128xf32>
      %c0_21 = arith.constant 0 : index
      %c0_22 = arith.constant 0 : index
      %33 = vector.load %arg6[%c0_21, %c0_22] : memref<1x128xf32, #tpu.memory_space<vmem>>, vector<1x128xf32>
      %34 = vector.broadcast %33 : vector<1x128xf32> to vector<16x128xf32>
      %35 = arith.addf %32, %34 : vector<16x128xf32>
      %c0_23 = arith.constant 0 : index
      %c0_24 = arith.constant 0 : index
      %36 = vector.load %arg7[%c0_23, %c0_24] : memref<16x128xf32, #tpu.memory_space<vmem>>, vector<16x128xf32>
      tpu.vector_store %arg7[%c0_23, %c0_24], %35 {strides = array<i32>} : memref<16x128xf32, #tpu.memory_space<vmem>>, vector<16x128xf32>,
    } else {
    }
    return
  }
  func.func @transform_0(%arg0: i32, %arg1: i32) -> (i32, i32) {
    %c0_i32 = arith.constant 0 : i32
    %c0_i32_0 = arith.constant 0 : i32
    return %arg0, %c0_i32 : i32, i32
  }
  func.func @transform_1(%arg0: i32, %arg1: i32) -> (i32, i32) {
    %c0_i32 = arith.constant 0 : i32
    %c0_i32_0 = arith.constant 0 : i32
    return %c0_i32, %arg1 : i32, i32
  }
  func.func @transform_2(%arg0: i32, %arg1: i32) -> (i32, i32) {
    %c0_i32 = arith.constant 0 : i32
    %c0_i32_0 = arith.constant 0 : i32
    return %c0_i32, %arg1 : i32, i32
  }
  func.func @transform_3(%arg0: i32, %arg1: i32) -> (i32, i32) {
    %c0_i32 = arith.constant 0 : i32
    %c0_i32_0 = arith.constant 0 : i32
    return %arg1, %c0_i32 : i32, i32
  }
  func.func @transform_4(%arg0: i32, %arg1: i32) -> (i32, i32) {
    %c0_i32 = arith.constant 0 : i32
    %c0_i32_0 = arith.constant 0 : i32
    %c0_i32_1 = arith.constant 0 : i32
    return %c0_i32, %c0_i32_0 : i32, i32
  }
  func.func @transform_5(%arg0: i32, %arg1: i32) -> (i32, i32) {
    %c0_i32 = arith.constant 0 : i32
    %c0_i32_0 = arith.constant 0 : i32
    return %arg0, %c0_i32 : i32, i32
  }
}

</mosaic_0001>

<llo_original>
// kernel: tpu_custom_call.1
$region0: #{tpu_custom_call.1}
  #allocation0 [shape = 'u32[]', space=smem, size = 0x4, offset = 0x4, fixed_abs, tag = 'smem constant byte address 0x4 - core index']
  #allocation1 [shape = 'u32[72,128]{1,0:T(1,128)}', space=vmem, size = 0x9000, scoped, tag = 'internal scratch']
  #allocation2 [shape = 'f32[16,128]{1,0:T(8,128)}', space=vmem, size = 0x2000, scoped, tag = 'scratch operand']
  %s0 = inlined_call_operand.hbm [shape: f32[16,128], index: 0, kind: input, shape index: {}]
  %s1 = inlined_call_operand.hbm [shape: bf16[128,128], index: 1, kind: input, shape index: {}]
  %s2 = inlined_call_operand.vmem [shape: f32[1,128], index: 2, kind: input, shape index: {}]
  %s3 = inlined_call_operand.hbm [shape: bf16[128,128], index: 3, kind: input, shape index: {}]
  %s4 = inlined_call_operand.vmem [shape: f32[1,128], index: 4, kind: input, shape index: {}]
  %s5 = inlined_call_operand.hbm [shape: f32[16,128], index: 5, kind: output, shape index: {}]
  %s6 = sld [smem:[#allocation0]]
  $region50: #{tpu_custom_call.1} parent=0
    _
  %s8 = ssub.s32 1, %s6
  %s9 = scalar_select 0, %s8, %s6
  $region1: #{tpu_custom_call.1} parent=0
    #allocation3 [shape = 'u8[8192]{0}', space=vmem, size = 0x2000, scoped, tag = 'input window, operand 0, single buffered']
    #allocation4 [shape = 's32[1]{0}', space=sflag, size = 0x4, scoped, tag = 'scoped memory for tpu_custom_call.1']
    #allocation5 [shape = 's32[1]{0}', space=sflag, size = 0x4, scoped, tag = 'scoped memory for tpu_custom_call.1']
    #allocation6 [shape = 'u8[32768]{0}', space=vmem, size = 0x8000, scoped, tag = 'input window, operand 1, single buffered']
    #allocation7 [shape = 's32[1]{0}', space=sflag, size = 0x4, scoped, tag = 'scoped memory for tpu_custom_call.1']
    #allocation8 [shape = 'u8[32768]{0}', space=vmem, size = 0x8000, scoped, tag = 'input window, operand 3, single buffered']
    #allocation9 [shape = 'u8[8192]{0}', space=vmem, size = 0x2000, scoped, tag = 'output window, operand 0, single buffered']
    %10 = vsyncpa [#allocation4], 0
    %11 = vsyncpa [#allocation7], 0
    %12 = vsyncpa [#allocation5], 0
    // Predicated region
    $region2: #{tpu_custom_call.1} parent=1 // pred_check
      _
    $region3: #{tpu_custom_call.1} parent=1 // pred_check_branch
      %14 = sbr.rel (0) target = $region5
    $region4: #{tpu_custom_call.1} parent=1 // pred_region
      %16 = vsyncadd [#allocation4], 0
      %s17 = sshll.u32 %s0, 4
      %s18 = int_to_ptr.hbm [resolvable:$true] %s17
      %s19 = sshll.u32 [#allocation3], 4
      %s20 = int_to_ptr.vmem [resolvable:$true] %s19
      %25 = dma.hbm_to_vmem [thread:$0]  %s18, 256, %s20, [#allocation4], 128, 128, 8
    $region5: #{tpu_custom_call.1} parent=1 // pred_fallthru
      _
    // Predicated region
    $region6: #{tpu_custom_call.1} parent=1 // pred_check
      _
    $region7: #{tpu_custom_call.1} parent=1 // pred_check_branch
      %27 = sbr.rel (0) target = $region9
    $region8: #{tpu_custom_call.1} parent=1 // pred_region
      %29 = vsyncadd [#allocation7], 0
      %s30 = sshll.u32 %s1, 4
      %s31 = int_to_ptr.hbm [resolvable:$true] %s30
      %s32 = sshll.u32 [#allocation6], 4
      %s33 = int_to_ptr.vmem [resolvable:$true] %s32
      %38 = dma.hbm_to_vmem [thread:$0]  %s31, 1024, %s33, [#allocation7], 64, 64, 4
    $region9: #{tpu_custom_call.1} parent=1 // pred_fallthru
      _
    // Predicated region
    $region10: #{tpu_custom_call.1} parent=1 // pred_check
      _
    $region11: #{tpu_custom_call.1} parent=1 // pred_check_branch
      %40 = sbr.rel (0) target = $region13
    $region12: #{tpu_custom_call.1} parent=1 // pred_region
      _
    $region13: #{tpu_custom_call.1} parent=1 // pred_fallthru
      _
    // Predicated region
    $region14: #{tpu_custom_call.1} parent=1 // pred_check
      _
    $region15: #{tpu_custom_call.1} parent=1 // pred_check_branch
      %42 = sbr.rel (0) target = $region17
    $region16: #{tpu_custom_call.1} parent=1 // pred_region
      %44 = vsyncadd [#allocation7], 0
      %s45 = sshll.u32 %s3, 4
      %s46 = int_to_ptr.hbm [resolvable:$true] %s45
      %s47 = sshll.u32 [#allocation8], 4
      %s48 = int_to_ptr.vmem [resolvable:$true] %s47
      %53 = dma.hbm_to_vmem [thread:$0]  %s46, 1024, %s48, [#allocation7], 64, 64, 4
    $region17: #{tpu_custom_call.1} parent=1 // pred_fallthru
      _
    // Predicated region
    $region18: #{tpu_custom_call.1} parent=1 // pred_check
      _
    $region19: #{tpu_custom_call.1} parent=1 // pred_check_branch
      %55 = sbr.rel (0) target = $region21
    $region20: #{tpu_custom_call.1} parent=1 // pred_region
      _
    $region21: #{tpu_custom_call.1} parent=1 // pred_fallthru
      _
    // Predicated region
    $region22: #{tpu_custom_call.1} parent=1 // pred_check
      _
    $region23: #{tpu_custom_call.1} parent=1 // pred_check_branch
      %57 = sbr.rel (0) target = $region25
    $region24: #{tpu_custom_call.1} parent=1 // pred_region
      %59 = dma.done [#allocation4], 256
    $region25: #{tpu_custom_call.1} parent=1 // pred_fallthru
      _
    // Predicated region
    $region26: #{tpu_custom_call.1} parent=1 // pred_check
      _
    $region27: #{tpu_custom_call.1} parent=1 // pred_check_branch
      %61 = sbr.rel (0) target = $region29
    $region28: #{tpu_custom_call.1} parent=1 // pred_region
      %63 = dma.done [#allocation7], 1024
    $region29: #{tpu_custom_call.1} parent=1 // pred_fallthru
      _
    // Predicated region
    $region30: #{tpu_custom_call.1} parent=1 // pred_check
      _
    $region31: #{tpu_custom_call.1} parent=1 // pred_check_branch
      %65 = sbr.rel (0) target = $region33
    $region32: #{tpu_custom_call.1} parent=1 // pred_region
      %67 = dma.done [#allocation7], 1024
    $region33: #{tpu_custom_call.1} parent=1 // pred_fallthru
      _
    %p68 = scmp.eq.s32.totalorder 0, 0
    // Predicated region
    $region34: #{tpu_custom_call.1} parent=1 // pred_check
      %p69 = pneg %p68
    $region35: #{tpu_custom_call.1} parent=1 // pred_check_branch
      %71 = sbr.rel (%p69) target = $region37
    $region36: #{tpu_custom_call.1} parent=1 // pred_region
      %72 = vst [vmem:[#allocation2] sm:$0xff] 0.0
      %73 = vst [vmem:[#allocation2 + $0x8] sm:$0xff] 0.0
    $region37: #{tpu_custom_call.1} parent=1 // pred_fallthru
      _
    %v74 = vld [vmem:[#allocation3] sm:$0xff]
    %v75 = vld [vmem:[#allocation3 + $0x8] sm:$0xff]
    %v76 = vpack.c.bf16 %v75, %v74
    %v77 = vld [vmem:[#allocation6] sm:$0xf]
    %v78 = vld [vmem:[#allocation6 + $0x4] sm:$0xf]
    %v79 = vld [vmem:[#allocation6 + $0x8] sm:$0xf]
    %v80 = vld [vmem:[#allocation6 + $0xc] sm:$0xf]
    %v81 = vld [vmem:[#allocation6 + $0x10] sm:$0xf]
    %v82 = vld [vmem:[#allocation6 + $0x14] sm:$0xf]
    %v83 = vld [vmem:[#allocation6 + $0x18] sm:$0xf]
    %v84 = vld [vmem:[#allocation6 + $0x1c] sm:$0xf]
    %v85 = vld [vmem:[#allocation6 + $0x20] sm:$0xf]
    %v86 = vld [vmem:[#allocation6 + $0x24] sm:$0xf]
    %v87 = vld [vmem:[#allocation6 + $0x28] sm:$0xf]
    %v88 = vld [vmem:[#allocation6 + $0x2c] sm:$0xf]
    %v89 = vld [vmem:[#allocation6 + $0x30] sm:$0xf]
    %v90 = vld [vmem:[#allocation6 + $0x34] sm:$0xf]
    %v91 = vld [vmem:[#allocation6 + $0x38] sm:$0xf]
    %v92 = vld [vmem:[#allocation6 + $0x3c] sm:$0xf]
    %v93 = vld [vmem:[%s2] sm:$0x1]
    %v95 = vperm.slane %v93, 0
    %v113 = vunpack.c.l.b16 %v77
    %v114 = vunpack.c.l.b16 %v78
    %v115 = vunpack.c.l.b16 %v79
    %v116 = vunpack.c.l.b16 %v80
    %v117 = vunpack.c.l.b16 %v81
    %v118 = vunpack.c.l.b16 %v82
    %v119 = vunpack.c.l.b16 %v83
    %v120 = vunpack.c.l.b16 %v84
    %v121 = vunpack.c.l.b16 %v85
    %v122 = vunpack.c.l.b16 %v86
    %v123 = vunpack.c.l.b16 %v87
    %v124 = vunpack.c.l.b16 %v88
    %v125 = vunpack.c.l.b16 %v89
    %v126 = vunpack.c.l.b16 %v90
    %v127 = vunpack.c.l.b16 %v91
    %v128 = vunpack.c.l.b16 %v92
    %v129 = vpack.c.b16 %v114, %v113
    %v130 = vpack.c.b16 %v116, %v115
    %v131 = vpack.c.b16 %v118, %v117
    %v132 = vpack.c.b16 %v120, %v119
    %v133 = vpack.c.b16 %v122, %v121
    %v134 = vpack.c.b16 %v124, %v123
    %v135 = vpack.c.b16 %v126, %v125
    %v136 = vpack.c.b16 %v128, %v127
    %145 = vmatpush.bf16.msra.mxu0 %v136
    %146 = vmatpush.bf16.msra.mxu0 %v135
    %147 = vmatpush.bf16.msra.mxu0 %v134
    %148 = vmatpush.bf16.msra.mxu0 %v133
    %149 = vmatpush.bf16.msra.mxu0 %v132
    %150 = vmatpush.bf16.msra.mxu0 %v131
    %151 = vmatpush.bf16.msra.mxu0 %v130
    %152 = vmatpush.bf16.msra.mxu0 %v129
    %153 = vmatmul.bf16.gmra.mxu0 %v76
    %v154 = vpop.f32.mrf.mxu0
    %v155 = vadd.f32 %v95, %v154
    %v156 = vpop.f32.mrf.mxu0
    %v157 = vadd.f32 %v95, %v156
    %158 = vdwg.mxu0
    %v159 = vmul.f32 %v155, %v155
    %v160 = vmul.f32 %v157, %v157
    %v161 = vmul.f32 %v155, %v159
    %v162 = vmul.f32 %v157, %v160
    %v163 = vmul.f32 %v161, 0.044715
    %v164 = vmul.f32 %v162, 0.044715
    %v165 = vadd.f32 %v155, %v163
    %v166 = vadd.f32 %v157, %v164
    %v167 = vmul.f32 %v165, 0.7978846
    %v168 = vmul.f32 %v166, 0.7978846
    %v169 = vtanh.pop %v167
    %v170 = vtanh.pop %v168
    %v171 = vadd.f32 %v169, 1.0
    %v172 = vadd.f32 %v170, 1.0
    %v173 = vmul.f32 %v171, 0.5
    %v174 = vmul.f32 %v172, 0.5
    %v175 = vmul.f32 %v155, %v173
    %v176 = vmul.f32 %v157, %v174
    %v177 = vld [vmem:[#allocation2] sm:$0xff]
    %v178 = vld [vmem:[#allocation2 + $0x8] sm:$0xff]
    %v179 = vpack.c.bf16 %v176, %v175
    %v180 = vld [vmem:[#allocation8] sm:$0xf]
    %v181 = vld [vmem:[#allocation8 + $0x4] sm:$0xf]
    %v182 = vld [vmem:[#allocation8 + $0x8] sm:$0xf]
    %v183 = vld [vmem:[#allocation8 + $0xc] sm:$0xf]
    %v184 = vld [vmem:[#allocation8 + $0x10] sm:$0xf]
    %v185 = vld [vmem:[#allocation8 + $0x14] sm:$0xf]
    %v186 = vld [vmem:[#allocation8 + $0x18] sm:$0xf]
    %v187 = vld [vmem:[#allocation8 + $0x1c] sm:$0xf]
    %v188 = vld [vmem:[#allocation8 + $0x20] sm:$0xf]
    %v189 = vld [vmem:[#allocation8 + $0x24] sm:$0xf]
    %v190 = vld [vmem:[#allocation8 + $0x28] sm:$0xf]
    %v191 = vld [vmem:[#allocation8 + $0x2c] sm:$0xf]
    %v192 = vld [vmem:[#allocation8 + $0x30] sm:$0xf]
    %v193 = vld [vmem:[#allocation8 + $0x34] sm:$0xf]
    %v194 = vld [vmem:[#allocation8 + $0x38] sm:$0xf]
    %v195 = vld [vmem:[#allocation8 + $0x3c] sm:$0xf]
    %v212 = vunpack.c.l.b16 %v180
    %v213 = vunpack.c.l.b16 %v181
    %v214 = vunpack.c.l.b16 %v182
    %v215 = vunpack.c.l.b16 %v183
    %v216 = vunpack.c.l.b16 %v184
    %v217 = vunpack.c.l.b16 %v185
    %v218 = vunpack.c.l.b16 %v186
    %v219 = vunpack.c.l.b16 %v187
    %v220 = vunpack.c.l.b16 %v188
    %v221 = vunpack.c.l.b16 %v189
    %v222 = vunpack.c.l.b16 %v190
    %v223 = vunpack.c.l.b16 %v191
    %v224 = vunpack.c.l.b16 %v192
    %v225 = vunpack.c.l.b16 %v193
    %v226 = vunpack.c.l.b16 %v194
    %v227 = vunpack.c.l.b16 %v195
    %v228 = vpack.c.b16 %v213, %v212
    %v229 = vpack.c.b16 %v215, %v214
    %v230 = vpack.c.b16 %v217, %v216
    %v231 = vpack.c.b16 %v219, %v218
    %v232 = vpack.c.b16 %v221, %v220
    %v233 = vpack.c.b16 %v223, %v222
    %v234 = vpack.c.b16 %v225, %v224
    %v235 = vpack.c.b16 %v227, %v226
    %244 = vmatpush.bf16.msra.mxu0 %v235
    %245 = vmatpush.bf16.msra.mxu0 %v234
    %246 = vmatpush.bf16.msra.mxu0 %v233
    %247 = vmatpush.bf16.msra.mxu0 %v232
    %248 = vmatpush.bf16.msra.mxu0 %v231
    %249 = vmatpush.bf16.msra.mxu0 %v230
    %250 = vmatpush.bf16.msra.mxu0 %v229
    %251 = vmatpush.bf16.msra.mxu0 %v228
    %252 = vmatmul.bf16.gmra.mxu0 %v179
    %v253 = vpop.f32.mrf.mxu0
    %v254 = vadd.f32 0.0, %v253
    %v255 = vpop.f32.mrf.mxu0
    %v256 = vadd.f32 0.0, %v255
    %257 = vdwg.mxu0
    %v258 = vadd.f32 %v177, %v254
    %v259 = vadd.f32 %v178, %v256
    %260 = vst [vmem:[#allocation2] sm:$0xff] %v258
    %261 = vst [vmem:[#allocation2 + $0x8] sm:$0xff] %v259
    // Predicated region
    $region38: #{tpu_custom_call.1} parent=1 // pred_check
      %p262 = pneg %p68
    $region39: #{tpu_custom_call.1} parent=1 // pred_check_branch
      %264 = sbr.rel (%p262) target = $region41
    $region40: #{tpu_custom_call.1} parent=1 // pred_region
      %v265 = vld [vmem:[#allocation2] sm:$0xff]
      %v266 = vld [vmem:[#allocation2 + $0x8] sm:$0xff]
      %v267 = vld [vmem:[%s4] sm:$0x1]
      %v269 = vperm.slane %v267, 0
      %v271 = vadd.f32 %v265, %v269
      %v272 = vadd.f32 %v266, %v269
      %273 = vst [vmem:[#allocation9] sm:$0xff] %v271
      %274 = vst [vmem:[#allocation9 + $0x8] sm:$0xff] %v272
    $region41: #{tpu_custom_call.1} parent=1 // pred_fallthru
      _
    // Predicated region
    $region42: #{tpu_custom_call.1} parent=1 // pred_check
      _
    $region43: #{tpu_custom_call.1} parent=1 // pred_check_branch
      %276 = sbr.rel (0) target = $region45
    $region44: #{tpu_custom_call.1} parent=1 // pred_region
      %278 = vsyncadd [#allocation5], 0
      %s279 = sshll.u32 [#allocation9], 4
      %s280 = int_to_ptr.vmem [resolvable:$true] %s279
      %s281 = sshll.u32 %s5, 4
      %s282 = int_to_ptr.hbm [resolvable:$true] %s281
      %287 = dma.vmem_to_hbm [thread:$0]  %s280, 256, %s282, [#allocation5], 128, 128, 8
    $region45: #{tpu_custom_call.1} parent=1 // pred_fallthru
      _
    // Predicated region
    $region46: #{tpu_custom_call.1} parent=1 // pred_check
      _
    $region47: #{tpu_custom_call.1} parent=1 // pred_check_branch
      %289 = sbr.rel (0) target = $region49
    $region48: #{tpu_custom_call.1} parent=1 // pred_region
      %291 = dma.done [#allocation5], 256
    $region49: #{tpu_custom_call.1} parent=1 // pred_fallthru
      _
    %292 = vsyncpa [#allocation4], 1
    %293 = vsyncpa [#allocation7], 1
    %294 = vsyncpa [#allocation5], 1

</llo_original>
